<compile_context>
chip_gen: v7x
topology: tpu7x:2x2x1
jax: 0.10.0
libtpu: 0.0.40
codegen_flags: <defaults>
</compile_context>

<pallas_src>
import functools

import jax
import jax.numpy as jnp
from jax import lax
from jax.experimental import pallas as pl
from jax.experimental.pallas import tpu as pltpu


def _round_up(a, m):
    return -(-a // m) * m


def _quant_codes_kernel(t_ref, o_ref, *, inv_s, qn, qp):
    """Elementwise LSQ quantization to integer codes (scale NOT applied)."""
    t = t_ref[...].astype(jnp.float32)
    o_ref[...] = jnp.clip(jnp.round(t * inv_s), qn, qp).astype(o_ref.dtype)


def _qlinear_matmul_kernel(*refs, quant_a, quant_w, inv_sa, a_qn, a_qp,
                           inv_sw, w_qn, w_qp, out_scale, has_bias,
                           compute_dtype):
    if has_bias:
        x_ref, w_ref, b_ref, y_ref, acc_ref = refs
    else:
        x_ref, w_ref, y_ref, acc_ref = refs
        b_ref = None

    k = pl.program_id(2)

    @pl.when(k == 0)
    def _():
        acc_ref[...] = jnp.zeros_like(acc_ref)

    # Activation: either raw floats (fused fake-quant here) or pre-computed
    # integer codes from the pre-pass (quant_a == False in that case).
    x = x_ref[...]
    if quant_a:
        x = jnp.clip(jnp.round(x.astype(jnp.float32) * inv_sa), a_qn, a_qp)
    x = x.astype(compute_dtype)

    # Weight: same deal, PyTorch [out, in] layout.
    w = w_ref[...]
    if quant_w:
        w = jnp.clip(jnp.round(w.astype(jnp.float32) * inv_sw), w_qn, w_qp)
    w = w.astype(compute_dtype)

    # Contract x[m, k] with w[n, k] along k (no weight transpose in HBM).
    acc_ref[...] += lax.dot_general(
        x, w,
        dimension_numbers=(((1,), (1,)), ((), ())),
        preferred_element_type=jnp.float32)

    @pl.when(k == pl.num_programs(2) - 1)
    def _():
        y = acc_ref[...]
        if out_scale != 1.0:
            y = y * out_scale          # s_a * s_w dequant, once per output tile
        if has_bias:
            y = y + b_ref[...]
        y_ref[...] = y.astype(y_ref.dtype)


def qlinear_forward(x, weight, bias=None, *, s_a=1.0, s_w=1.0,
                    q_bits_a=8, q_bits_w=8,
                    tm=256, tn=512, tk=512, out_dtype=None):
    """x: [B, in_features]; weight: [out_features, in_features] (PyTorch layout);
    bias: [out_features] or None; s_a, s_w: python-float LSQ step sizes."""
    B, K = x.shape
    N, K2 = weight.shape
    assert K == K2, "weight/in_features mismatch"

    quant_a = q_bits_a is not None
    quant_w = q_bits_w is not None
    has_bias = bias is not None
    out_dtype = out_dtype or x.dtype

    # Signed LSQ integer-grid bounds, baked in as compile-time constants.
    if quant_a:
        a_qn, a_qp = float(-(2 ** (q_bits_a - 1))), float(2 ** (q_bits_a - 1) - 1)
    else:
        a_qn = a_qp = 0.0
    if quant_w:
        w_qn, w_qp = float(-(2 ** (q_bits_w - 1))), float(2 ** (q_bits_w - 1) - 1)
    else:
        w_qn = w_qp = 0.0

    # Guard near-zero steps; precompute reciprocals (no per-element divides).
    s_a = max(float(s_a), 1e-12)
    s_w = max(float(s_w), 1e-12)
    inv_sa, inv_sw = 1.0 / s_a, 1.0 / s_w
    out_scale = (s_a if quant_a else 1.0) * (s_w if quant_w else 1.0)

    # Integer codes are exact in bf16 only while |code| fits in 8 mantissa
    # bits; feed the MXU bf16 only when both operands are such codes.
    a_codes_bf16 = quant_a and q_bits_a <= 8
    w_codes_bf16 = quant_w and q_bits_w <= 8
    compute_dtype = jnp.bfloat16 if (a_codes_bf16 and w_codes_bf16) else jnp.float32

    # Tile sizes clipped to the (padded) problem dims; keep (8, 128) alignment.
    tm = min(tm, _round_up(B, 8))
    tn = min(tn, _round_up(N, 128))
    tk = min(tk, _round_up(K, 128))
    Bp, Np, Kp = _round_up(B, tm), _round_up(N, tn), _round_up(K, tk)
    n_m_tiles, n_n_tiles, n_k_tiles = Bp // tm, Np // tn, Kp // tk

    x_p = x if (Bp, Kp) == (B, K) else jnp.pad(x, ((0, Bp - B), (0, Kp - K)))
    w_p = weight if (Np, Kp) == (N, K) else jnp.pad(
        weight, ((0, Np - N), (0, Kp - K)))

    # Hoist quantization into a one-shot pre-pass only when the matmul grid
    # would otherwise recompute it (and re-read f32 operands) multiple times.
    prequant_w = quant_w and n_m_tiles > 1
    prequant_x = quant_a and n_n_tiles > 1

    if prequant_w:
        w_code_dtype = jnp.bfloat16 if w_codes_bf16 else jnp.float32
        w_p = pl.pallas_call(
            functools.partial(_quant_codes_kernel,
                              inv_s=inv_sw, qn=w_qn, qp=w_qp),
            out_shape=jax.ShapeDtypeStruct((Np, Kp), w_code_dtype),
            grid=(n_n_tiles, n_k_tiles),
            in_specs=[pl.BlockSpec((tn, tk), lambda i, j: (i, j))],
            out_specs=pl.BlockSpec((tn, tk), lambda i, j: (i, j)),
            compiler_params=pltpu.CompilerParams(
                dimension_semantics=("parallel", "parallel")),
        )(w_p)

    if prequant_x:
        x_code_dtype = jnp.bfloat16 if a_codes_bf16 else jnp.float32
        x_p = pl.pallas_call(
            functools.partial(_quant_codes_kernel,
                              inv_s=inv_sa, qn=a_qn, qp=a_qp),
            out_shape=jax.ShapeDtypeStruct((Bp, Kp), x_code_dtype),
            grid=(n_m_tiles, n_k_tiles),
            in_specs=[pl.BlockSpec((tm, tk), lambda i, j: (i, j))],
            out_specs=pl.BlockSpec((tm, tk), lambda i, j: (i, j)),
            compiler_params=pltpu.CompilerParams(
                dimension_semantics=("parallel", "parallel")),
        )(x_p)

    # ---- Tiled matmul with f32 accumulator and epilogue rescale + bias ----
    args = [x_p, w_p]
    in_specs = [
        pl.BlockSpec((tm, tk), lambda i, j, k: (i, k)),   # x tile
        pl.BlockSpec((tn, tk), lambda i, j, k: (j, k)),   # w tile ([out, in])
    ]
    if has_bias:
        b_p = bias.astype(jnp.float32)
        if Np != N:
            b_p = jnp.pad(b_p, (0, Np - N))
        args.append(b_p.reshape(1, Np))
        in_specs.append(pl.BlockSpec((1, tn), lambda i, j, k: (0, j)))

    kernel = functools.partial(
        _qlinear_matmul_kernel,
        quant_a=quant_a and not prequant_x,
        quant_w=quant_w and not prequant_w,
        inv_sa=inv_sa, a_qn=a_qn, a_qp=a_qp,
        inv_sw=inv_sw, w_qn=w_qn, w_qp=w_qp,
        out_scale=out_scale, has_bias=has_bias,
        compute_dtype=compute_dtype)

    y_p = pl.pallas_call(
        kernel,
        out_shape=jax.ShapeDtypeStruct((Bp, Np), out_dtype),
        grid_spec=pltpu.PrefetchScalarGridSpec(
            num_scalar_prefetch=0,
            grid=(n_m_tiles, n_n_tiles, n_k_tiles),
            in_specs=in_specs,
            out_specs=pl.BlockSpec((tm, tn), lambda i, j, k: (i, j)),
            scratch_shapes=[pltpu.VMEM((tm, tn), jnp.float32)]),
        compiler_params=pltpu.CompilerParams(
            dimension_semantics=("parallel", "parallel", "arbitrary")),
    )(*args)

    return y_p[:B, :N]


def _reference_forward(x, weight, bias, s_a, s_w, q_bits_a, q_bits_w):
    """Pure-JAX reference mirroring the PyTorch forward.

    NOTE: quantization uses multiply-by-reciprocal (like the kernel) rather
    than a divide; the two differ by <= 1 ulp before rounding, far below the
    quantization step."""
    xq = x
    if q_bits_a is not None:
        qn, qp = -(2 ** (q_bits_a - 1)), 2 ** (q_bits_a - 1) - 1
        xq = jnp.clip(jnp.round(x * (1.0 / s_a)), qn, qp) * s_a
    wq = weight
    if q_bits_w is not None:
        qn, qp = -(2 ** (q_bits_w - 1)), 2 ** (q_bits_w - 1) - 1
        wq = jnp.clip(jnp.round(weight * (1.0 / s_w)), qn, qp) * s_w
    y = xq @ wq.T
    if bias is not None:
        y = y + bias
    return y


if __name__ == "__main__":
    key = jax.random.PRNGKey(0)

    # (batch, in_features, out_features, bias, q_bits_w, q_bits_a)
    cases = [
        (4, 32, 16, True, 8, 8),          # tiny, heavy padding, fused quant path
        (32, 1024, 1024, True, 8, 8),     # multi-tile: K accum + N tiling + x/W pre-pass
        (8, 256, 128, False, 8, 8),       # no bias path
        (16, 512, 256, True, 8, None),    # weight-only quant (f32 compute)
        (4, 32, 16, True, None, None),    # quantization disabled (plain linear)
    ]

    for idx, (batch, in_f, out_f, use_bias, qb_w, qb_a) in enumerate(cases):
        key, k_x, k_w, k_b = jax.random.split(key, 4)

        # nn.Linear.reset_parameters(): uniform(-1/sqrt(in), 1/sqrt(in)).
        bound = 1.0 / (in_f ** 0.5)
        weight = jax.random.uniform(k_w, (out_f, in_f), jnp.float32,
                                    -bound, bound)
        bias = (jax.random.uniform(k_b, (out_f,), jnp.float32, -bound, bound)
                if use_bias else None)
        x = jax.random.normal(k_x, (batch, in_f), jnp.float32)

        # LSQ step-size init: 2 * mean(|t|) / sqrt(Qp).
        s_w_val = s_a_val = 1.0
        if qb_w is not None:
            qp_w = float(2 ** (qb_w - 1) - 1)
            s_w_val = float(2.0 * jnp.mean(jnp.abs(weight)) / (qp_w ** 0.5))
        if qb_a is not None:
            qp_a = float(2 ** (qb_a - 1) - 1)
            s_a_val = float(2.0 * jnp.mean(jnp.abs(x)) / (qp_a ** 0.5))

        y = qlinear_forward(x, weight, bias, s_a=s_a_val, s_w=s_w_val,
                            q_bits_a=qb_a, q_bits_w=qb_w)
        y = jax.block_until_ready(y)

        y_ref = _reference_forward(x, weight, bias, s_a_val, s_w_val, qb_a, qb_w)
        assert y.shape == (batch, out_f)
        assert jnp.allclose(y, y_ref, atol=1e-3, rtol=1e-3), (
            f"case {idx}: max |err| = "
            f"{float(jnp.max(jnp.abs(y - y_ref)))}")

    print("KERNEL_OK")
</pallas_src>

<mosaic_0001>
module attributes {stable_mosaic.version = 11 : i64} {
  func.func @_qlinear_matmul_kernel(%arg0: i32, %arg1: i32, %arg2: i32, %arg3: memref<8x128xf32, #tpu.memory_space<vmem>>, %arg4: memref<128x128xf32, #tpu.memory_space<vmem>>, %arg5: memref<1x128xf32, #tpu.memory_space<vmem>>, %arg6: memref<8x128xf32, #tpu.memory_space<vmem>>, %arg7: memref<8x128xf32, #tpu.memory_space<vmem>>) attributes {dimension_semantics = [#tpu.dimension_semantics<parallel>, #tpu.dimension_semantics<parallel>, #tpu.dimension_semantics<arbitrary>], iteration_bounds = array<i64: 1, 1, 1>, scalar_prefetch = 0 : i64, scratch_operands = 1 : i64, tpu.core_type = #tpu.core_type<tc>, window_params = [{transform_indices = @transform_0, window_bounds = array<i64: 8, 128>}, {transform_indices = @transform_1, window_bounds = array<i64: 128, 128>}, {transform_indices = @transform_2, window_bounds = array<i64: 1, 128>}, {transform_indices = @transform_3, window_bounds = array<i64: 8, 128>}]} {
    %c0_i32 = arith.constant 0 : i32
    %0 = arith.cmpi eq, %arg2, %c0_i32 : i32
    %1 = arith.extui %0 : i1 to i32
    %c0_i32_0 = arith.constant 0 : i32
    %2 = arith.cmpi ne, %1, %c0_i32_0 : i32
    scf.if %2 {
      %cst_16 = arith.constant 0.000000e+00 : f32
      %28 = vector.broadcast %cst_16 : f32 to vector<8x128xf32>
      %c0_17 = arith.constant 0 : index
      %c0_18 = arith.constant 0 : index
      %29 = vector.load %arg7[%c0_17, %c0_18] : memref<8x128xf32, #tpu.memory_space<vmem>>, vector<8x128xf32>
      tpu.vector_store %arg7[%c0_17, %c0_18], %28 {strides = array<i32>} : memref<8x128xf32, #tpu.memory_space<vmem>>, vector<8x128xf32>,
    } else {
    }
    %c0 = arith.constant 0 : index
    %c0_1 = arith.constant 0 : index
    %3 = vector.load %arg3[%c0, %c0_1] : memref<8x128xf32, #tpu.memory_space<vmem>>, vector<8x128xf32>
    %cst = arith.constant 6.89217615 : f32
    %4 = vector.broadcast %cst : f32 to vector<8x128xf32>
    %5 = arith.mulf %3, %4 : vector<8x128xf32>
    %6 = math.roundeven %5 : vector<8x128xf32>
    %cst_2 = arith.constant -1.280000e+02 : f32
    %cst_3 = arith.constant 1.270000e+02 : f32
    %7 = vector.broadcast %cst_2 : f32 to vector<8x128xf32>
    %8 = arith.maximumf %7, %6 : vector<8x128xf32>
    %9 = vector.broadcast %cst_3 : f32 to vector<8x128xf32>
    %10 = arith.minimumf %9, %8 : vector<8x128xf32>
    %11 = arith.truncf %10 : vector<8x128xf32> to vector<8x128xbf16>
    %c0_4 = arith.constant 0 : index
    %c0_5 = arith.constant 0 : index
    %12 = vector.load %arg4[%c0_4, %c0_5] : memref<128x128xf32, #tpu.memory_space<vmem>>, vector<128x128xf32>
    %cst_6 = arith.constant 61.6644478 : f32
    %13 = vector.broadcast %cst_6 : f32 to vector<128x128xf32>
    %14 = arith.mulf %12, %13 : vector<128x128xf32>
    %15 = math.roundeven %14 : vector<128x128xf32>
    %cst_7 = arith.constant -1.280000e+02 : f32
    %cst_8 = arith.constant 1.270000e+02 : f32
    %16 = vector.broadcast %cst_7 : f32 to vector<128x128xf32>
    %17 = arith.maximumf %16, %15 : vector<128x128xf32>
    %18 = vector.broadcast %cst_8 : f32 to vector<128x128xf32>
    %19 = arith.minimumf %18, %17 : vector<128x128xf32>
    %20 = arith.truncf %19 : vector<128x128xf32> to vector<128x128xbf16>
    %c0_9 = arith.constant 0 : index
    %c0_10 = arith.constant 0 : index
    %21 = vector.load %arg7[%c0_9, %c0_10] : memref<8x128xf32, #tpu.memory_space<vmem>>, vector<8x128xf32>
    %cst_11 = arith.constant dense<0.000000e+00> : vector<8x128xf32>
    %22 = tpu.matmul %11, %20, %cst_11 {dimension_numbers = #tpu.dot_dimension_numbers<[1], [1], [0], [0], [0, 0, 1, 0], [], []>} : vector<8x128xbf16>, vector<128x128xbf16>, vector<8x128xf32> -> vector<8x128xf32>
    %23 = arith.addf %21, %22 : vector<8x128xf32>
    %c0_12 = arith.constant 0 : index
    %c0_13 = arith.constant 0 : index
    %24 = vector.load %arg7[%c0_12, %c0_13] : memref<8x128xf32, #tpu.memory_space<vmem>>, vector<8x128xf32>
    tpu.vector_store %arg7[%c0_12, %c0_13], %23 {strides = array<i32>} : memref<8x128xf32, #tpu.memory_space<vmem>>, vector<8x128xf32>,
    %c0_i32_14 = arith.constant 0 : i32
    %25 = arith.cmpi eq, %arg2, %c0_i32_14 : i32
    %26 = arith.extui %25 : i1 to i32
    %c0_i32_15 = arith.constant 0 : i32
    %27 = arith.cmpi ne, %26, %c0_i32_15 : i32
    scf.if %27 {
      %c0_16 = arith.constant 0 : index
      %c0_17 = arith.constant 0 : index
      %28 = vector.load %arg7[%c0_16, %c0_17] : memref<8x128xf32, #tpu.memory_space<vmem>>, vector<8x128xf32>
      %cst_18 = arith.constant 0.00235292874 : f32
      %29 = vector.broadcast %cst_18 : f32 to vector<8x128xf32>
      %30 = arith.mulf %28, %29 : vector<8x128xf32>
      %c0_19 = arith.constant 0 : index
      %c0_20 = arith.constant 0 : index
      %31 = vector.load %arg5[%c0_19, %c0_20] : memref<1x128xf32, #tpu.memory_space<vmem>>, vector<1x128xf32>
      %32 = vector.broadcast %31 : vector<1x128xf32> to vector<8x128xf32>
      %33 = arith.addf %30, %32 : vector<8x128xf32>
      %c0_21 = arith.constant 0 : index
      %c0_22 = arith.constant 0 : index
      %34 = vector.load %arg6[%c0_21, %c0_22] : memref<8x128xf32, #tpu.memory_space<vmem>>, vector<8x128xf32>
      tpu.vector_store %arg6[%c0_21, %c0_22], %33 {strides = array<i32>} : memref<8x128xf32, #tpu.memory_space<vmem>>, vector<8x128xf32>,
    } else {
    }
    return
  }
  func.func @transform_0(%arg0: i32, %arg1: i32, %arg2: i32) -> (i32, i32) {
    %c0_i32 = arith.constant 0 : i32
    return %arg0, %arg2 : i32, i32
  }
  func.func @transform_1(%arg0: i32, %arg1: i32, %arg2: i32) -> (i32, i32) {
    %c0_i32 = arith.constant 0 : i32
    return %arg1, %arg2 : i32, i32
  }
  func.func @transform_2(%arg0: i32, %arg1: i32, %arg2: i32) -> (i32, i32) {
    %c0_i32 = arith.constant 0 : i32
    %c0_i32_0 = arith.constant 0 : i32
    return %c0_i32, %arg1 : i32, i32
  }
  func.func @transform_3(%arg0: i32, %arg1: i32, %arg2: i32) -> (i32, i32) {
    %c0_i32 = arith.constant 0 : i32
    return %arg0, %arg1 : i32, i32
  }
}

</mosaic_0001>

<llo_original>
// kernel: tpu_custom_call.1
$region0: #{tpu_custom_call.1}
  #allocation0 [shape = 'u32[]', space=smem, size = 0x4, offset = 0x4, fixed_abs, tag = 'smem constant byte address 0x4 - core index']
  #allocation1 [shape = 'u32[144,128]{1,0:T(1,128)}', space=vmem, size = 0x12000, scoped, tag = 'internal scratch']
  #allocation2 [shape = 'f32[8,128]{1,0:T(8,128)}', space=vmem, size = 0x1000, scoped, tag = 'scratch operand']
  %s0 = inlined_call_operand.hbm [shape: f32[8,128], index: 0, kind: input, shape index: {}]
  %s1 = inlined_call_operand.hbm [shape: f32[128,128], index: 1, kind: input, shape index: {}]
  %s2 = inlined_call_operand.vmem [shape: f32[1,128], index: 2, kind: input, shape index: {}]
  %s3 = inlined_call_operand.hbm [shape: f32[8,128], index: 3, kind: output, shape index: {}]
  %s4 = sld [smem:[#allocation0]]
  $region38: #{tpu_custom_call.1} parent=0
    _
  %s6 = ssub.s32 1, %s4
  %s7 = scalar_select 0, %s6, %s4
  $region1: #{tpu_custom_call.1} parent=0
    #allocation3 [shape = 'u8[4096]{0}', space=vmem, size = 0x1000, scoped, tag = 'input window, operand 0, single buffered']
    #allocation4 [shape = 's32[1]{0}', space=sflag, size = 0x4, scoped, tag = 'scoped memory for tpu_custom_call.1']
    #allocation5 [shape = 's32[1]{0}', space=sflag, size = 0x4, scoped, tag = 'scoped memory for tpu_custom_call.1']
    #allocation6 [shape = 'u8[65536]{0}', space=vmem, size = 0x10000, scoped, tag = 'input window, operand 1, single buffered']
    #allocation7 [shape = 's32[1]{0}', space=sflag, size = 0x4, scoped, tag = 'scoped memory for tpu_custom_call.1']
    #allocation8 [shape = 'u8[4096]{0}', space=vmem, size = 0x1000, scoped, tag = 'output window, operand 0, single buffered']
    %8 = vsyncpa [#allocation4], 0
    %9 = vsyncpa [#allocation7], 0
    %10 = vsyncpa [#allocation5], 0
    // Predicated region
    $region2: #{tpu_custom_call.1} parent=1 // pred_check
      _
    $region3: #{tpu_custom_call.1} parent=1 // pred_check_branch
      %12 = sbr.rel (0) target = $region5
    $region4: #{tpu_custom_call.1} parent=1 // pred_region
      %s14 = ssub.s32 128, 128
      %15 = vsyncadd [#allocation4], %s14
      %s17 = sshll.u32 [#allocation3], 4
      %s18 = int_to_ptr.vmem [resolvable:$true] %s17
      %20 = dma.hbm_to_vmem [thread:$0]  %s0, 128, %s18, [#allocation4]
    $region5: #{tpu_custom_call.1} parent=1 // pred_fallthru
      _
    // Predicated region
    $region6: #{tpu_custom_call.1} parent=1 // pred_check
      _
    $region7: #{tpu_custom_call.1} parent=1 // pred_check_branch
      %22 = sbr.rel (0) target = $region9
    $region8: #{tpu_custom_call.1} parent=1 // pred_region
      %s24 = ssub.s32 2048, 2048
      %25 = vsyncadd [#allocation7], %s24
      %s26 = sshll.u32 [#allocation6], 4
      %s27 = int_to_ptr.vmem [resolvable:$true] %s26
      %32 = dma.hbm_to_vmem [thread:$0]  %s1, 2048, %s27, [#allocation7], 128, 128, 8
    $region9: #{tpu_custom_call.1} parent=1 // pred_fallthru
      _
    // Predicated region
    $region10: #{tpu_custom_call.1} parent=1 // pred_check
      _
    $region11: #{tpu_custom_call.1} parent=1 // pred_check_branch
      %34 = sbr.rel (0) target = $region13
    $region12: #{tpu_custom_call.1} parent=1 // pred_region
      _
    $region13: #{tpu_custom_call.1} parent=1 // pred_fallthru
      _
    // Predicated region
    $region14: #{tpu_custom_call.1} parent=1 // pred_check
      _
    $region15: #{tpu_custom_call.1} parent=1 // pred_check_branch
      %36 = sbr.rel (0) target = $region17
    $region16: #{tpu_custom_call.1} parent=1 // pred_region
      %37 = dma.done [#allocation4], 128
    $region17: #{tpu_custom_call.1} parent=1 // pred_fallthru
      _
    // Predicated region
    $region18: #{tpu_custom_call.1} parent=1 // pred_check
      _
    $region19: #{tpu_custom_call.1} parent=1 // pred_check_branch
      %39 = sbr.rel (0) target = $region21
    $region20: #{tpu_custom_call.1} parent=1 // pred_region
      %40 = dma.done [#allocation7], 2048
    $region21: #{tpu_custom_call.1} parent=1 // pred_fallthru
      _
    %p42 = scmp.eq.s32.totalorder 0, 0
    // Predicated region
    $region22: #{tpu_custom_call.1} parent=1 // pred_check
      %p43 = pneg %p42
    $region23: #{tpu_custom_call.1} parent=1 // pred_check_branch
      %45 = sbr.rel (%p43) target = $region25
    $region24: #{tpu_custom_call.1} parent=1 // pred_region
      %46 = vst [vmem:[#allocation2] sm:$0xff] 0.0
    $region25: #{tpu_custom_call.1} parent=1 // pred_fallthru
      _
    %v47 = vld [vmem:[#allocation3] sm:$0xff]
    %v48 = vmul.f32 %v47, 6.892176
    %v49 = vround.ne.pseudo %v48
    %v50 = vmax.f32 %v49, -128.0
    %v51 = vmin.f32 %v50, 127.0
    %v52 = vpack.c.bf16 %v51, %v51
    %v53 = vld [vmem:[#allocation6] sm:$0xff]
    %v54 = vld [vmem:[#allocation6 + $0x8] sm:$0xff]
    %v55 = vld [vmem:[#allocation6 + $0x10] sm:$0xff]
    %v56 = vld [vmem:[#allocation6 + $0x18] sm:$0xff]
    %v57 = vld [vmem:[#allocation6 + $0x20] sm:$0xff]
    %v58 = vld [vmem:[#allocation6 + $0x28] sm:$0xff]
    %v59 = vld [vmem:[#allocation6 + $0x30] sm:$0xff]
    %v60 = vld [vmem:[#allocation6 + $0x38] sm:$0xff]
    %v61 = vld [vmem:[#allocation6 + $0x40] sm:$0xff]
    %v62 = vld [vmem:[#allocation6 + $0x48] sm:$0xff]
    %v63 = vld [vmem:[#allocation6 + $0x50] sm:$0xff]
    %v64 = vld [vmem:[#allocation6 + $0x58] sm:$0xff]
    %v65 = vld [vmem:[#allocation6 + $0x60] sm:$0xff]
    %v66 = vld [vmem:[#allocation6 + $0x68] sm:$0xff]
    %v67 = vld [vmem:[#allocation6 + $0x70] sm:$0xff]
    %v68 = vld [vmem:[#allocation6 + $0x78] sm:$0xff]
    %v69 = vmul.f32 %v53, 61.664448
    %v70 = vmul.f32 %v54, 61.664448
    %v71 = vmul.f32 %v55, 61.664448
    %v72 = vmul.f32 %v56, 61.664448
    %v73 = vmul.f32 %v57, 61.664448
    %v74 = vmul.f32 %v58, 61.664448
    %v75 = vmul.f32 %v59, 61.664448
    %v76 = vmul.f32 %v60, 61.664448
    %v77 = vmul.f32 %v61, 61.664448
    %v78 = vmul.f32 %v62, 61.664448
    %v79 = vmul.f32 %v63, 61.664448
    %v80 = vmul.f32 %v64, 61.664448
    %v81 = vmul.f32 %v65, 61.664448
    %v82 = vmul.f32 %v66, 61.664448
    %v83 = vmul.f32 %v67, 61.664448
    %v84 = vmul.f32 %v68, 61.664448
    %v85 = vround.ne.pseudo %v69
    %v86 = vround.ne.pseudo %v70
    %v87 = vround.ne.pseudo %v71
    %v88 = vround.ne.pseudo %v72
    %v89 = vround.ne.pseudo %v73
    %v90 = vround.ne.pseudo %v74
    %v91 = vround.ne.pseudo %v75
    %v92 = vround.ne.pseudo %v76
    %v93 = vround.ne.pseudo %v77
    %v94 = vround.ne.pseudo %v78
    %v95 = vround.ne.pseudo %v79
    %v96 = vround.ne.pseudo %v80
    %v97 = vround.ne.pseudo %v81
    %v98 = vround.ne.pseudo %v82
    %v99 = vround.ne.pseudo %v83
    %v100 = vround.ne.pseudo %v84
    %v101 = vmax.f32 %v85, -128.0
    %v102 = vmax.f32 %v86, -128.0
    %v103 = vmax.f32 %v87, -128.0
    %v104 = vmax.f32 %v88, -128.0
    %v105 = vmax.f32 %v89, -128.0
    %v106 = vmax.f32 %v90, -128.0
    %v107 = vmax.f32 %v91, -128.0
    %v108 = vmax.f32 %v92, -128.0
    %v109 = vmax.f32 %v93, -128.0
    %v110 = vmax.f32 %v94, -128.0
    %v111 = vmax.f32 %v95, -128.0
    %v112 = vmax.f32 %v96, -128.0
    %v113 = vmax.f32 %v97, -128.0
    %v114 = vmax.f32 %v98, -128.0
    %v115 = vmax.f32 %v99, -128.0
    %v116 = vmax.f32 %v100, -128.0
    %v117 = vmin.f32 %v101, 127.0
    %v118 = vmin.f32 %v102, 127.0
    %v119 = vmin.f32 %v103, 127.0
    %v120 = vmin.f32 %v104, 127.0
    %v121 = vmin.f32 %v105, 127.0
    %v122 = vmin.f32 %v106, 127.0
    %v123 = vmin.f32 %v107, 127.0
    %v124 = vmin.f32 %v108, 127.0
    %v125 = vmin.f32 %v109, 127.0
    %v126 = vmin.f32 %v110, 127.0
    %v127 = vmin.f32 %v111, 127.0
    %v128 = vmin.f32 %v112, 127.0
    %v129 = vmin.f32 %v113, 127.0
    %v130 = vmin.f32 %v114, 127.0
    %v131 = vmin.f32 %v115, 127.0
    %v132 = vmin.f32 %v116, 127.0
    %v133 = vpack.c.bf16 %v118, %v117
    %v134 = vpack.c.bf16 %v120, %v119
    %v135 = vpack.c.bf16 %v122, %v121
    %v136 = vpack.c.bf16 %v124, %v123
    %v137 = vpack.c.bf16 %v126, %v125
    %v138 = vpack.c.bf16 %v128, %v127
    %v139 = vpack.c.bf16 %v130, %v129
    %v140 = vpack.c.bf16 %v132, %v131
    %v141 = vld [vmem:[#allocation2] sm:$0xff]
    %142 = vmatprep.subr.bf16.mxu0 0
    %143 = vmatpush1.bf16.xpose.msra.mxu0 %v133
    %144 = vmatprep.subr.bf16.mxu0 0
    %145 = vmatpush1.bf16.xpose.msra.mxu0 %v134
    %146 = vmatprep.subr.bf16.mxu0 0
    %147 = vmatpush1.bf16.xpose.msra.mxu0 %v135
    %148 = vmatprep.subr.bf16.mxu0 0
    %149 = vmatpush1.bf16.xpose.msra.mxu0 %v136
    %150 = vmatprep.subr.bf16.mxu0 0
    %151 = vmatpush1.bf16.xpose.msra.mxu0 %v137
    %152 = vmatprep.subr.bf16.mxu0 0
    %153 = vmatpush1.bf16.xpose.msra.mxu0 %v138
    %154 = vmatprep.subr.bf16.mxu0 0
    %155 = vmatpush1.bf16.xpose.msra.mxu0 %v139
    %156 = vmatprep.subr.bf16.mxu0 0
    %157 = vmatpush1.bf16.xpose.msra.mxu0 %v140
    %158 = vmatprep.subr.bf16.mxu0 0
    %159 = vmatpush1.bf16.xpose.msra.mxu0 0
    %160 = vmatprep.subr.bf16.mxu0 0
    %161 = vmatpush1.bf16.xpose.msra.mxu0 0
    %162 = vmatprep.subr.bf16.mxu0 0
    %163 = vmatpush1.bf16.xpose.msra.mxu0 0
    %164 = vmatprep.subr.bf16.mxu0 0
    %165 = vmatpush1.bf16.xpose.msra.mxu0 0
    %166 = vmatprep.subr.bf16.mxu0 0
    %167 = vmatpush1.bf16.xpose.msra.mxu0 0
    %168 = vmatprep.subr.bf16.mxu0 0
    %169 = vmatpush1.bf16.xpose.msra.mxu0 0
    %170 = vmatprep.subr.bf16.mxu0 0
    %171 = vmatpush1.bf16.xpose.msra.mxu0 0
    %172 = vmatprep.subr.bf16.mxu0 0
    %173 = vmatpush1.bf16.xpose.msra.mxu0 0
    %174 = vmatprep.mubr.bf16.mxu0 0
    %175 = vmatmul.mubr.bf16.gmra.mrb[0].mxu0 %v52
    %v176 = vpop.f32.mrb[0].mxu0
    %v177 = vadd.f32 0.0, %v176
    %v178 = vpop.f32.mrb[0].mxu0
    %v179 = vpop.f32.mrb[0].mxu0
    %v180 = vpop.f32.mrb[0].mxu0
    %181 = vdwg.mxu0
    %v182 = vadd.f32 %v141, %v177
    %183 = vst [vmem:[#allocation2] sm:$0xff] %v182
    // Predicated region
    $region26: #{tpu_custom_call.1} parent=1 // pred_check
      %p184 = pneg %p42
    $region27: #{tpu_custom_call.1} parent=1 // pred_check_branch
      %186 = sbr.rel (%p184) target = $region29
    $region28: #{tpu_custom_call.1} parent=1 // pred_region
      %v187 = vld [vmem:[#allocation2] sm:$0xff]
      %v188 = vmul.f32 %v187, 0.0023529287
      %v189 = vld [vmem:[%s2] sm:$0x1]
      %v191 = vlaneseq
      %v192 = vshrl.u32 %v191, 7
      %v193 = vsub.s32 0, %v192
      %v194 = vrot.slane %v189, %v193
      %v196 = vadd.f32 %v188, %v194
      %197 = vst [vmem:[#allocation8] sm:$0xff] %v196
    $region29: #{tpu_custom_call.1} parent=1 // pred_fallthru
      _
    // Predicated region
    $region30: #{tpu_custom_call.1} parent=1 // pred_check
      _
    $region31: #{tpu_custom_call.1} parent=1 // pred_check_branch
      %199 = sbr.rel (0) target = $region33
    $region32: #{tpu_custom_call.1} parent=1 // pred_region
      %s201 = ssub.s32 128, 128
      %202 = vsyncadd [#allocation5], %s201
      %s204 = sshll.u32 [#allocation8], 4
      %s205 = int_to_ptr.vmem [resolvable:$true] %s204
      %207 = dma.vmem_to_hbm [thread:$0]  %s205, 128, %s3, [#allocation5]
    $region33: #{tpu_custom_call.1} parent=1 // pred_fallthru
      _
    // Predicated region
    $region34: #{tpu_custom_call.1} parent=1 // pred_check
      _
    $region35: #{tpu_custom_call.1} parent=1 // pred_check_branch
      %209 = sbr.rel (0) target = $region37
    $region36: #{tpu_custom_call.1} parent=1 // pred_region
      %210 = dma.done [#allocation5], 128
    $region37: #{tpu_custom_call.1} parent=1 // pred_fallthru
      _
    %211 = vsyncpa [#allocation4], 1
    %212 = vsyncpa [#allocation7], 1
    %213 = vsyncpa [#allocation5], 1

</llo_original>
